<compile_context>
chip_gen: v7x
topology: tpu7x:2x2x1
jax: 0.10.0
libtpu: 0.0.40
codegen_flags: <defaults>
</compile_context>

<pallas_src>
import functools

import jax
import jax.numpy as jnp
from jax.experimental import pallas as pl
from jax.experimental.pallas import tpu as pltpu


def _ls_ce_kernel(x_ref, t_ref, out_ref, acc_ref, *,
                  n_rows, smooth_scale, confidence,
                  steps_per_part, block_rows):
    """Streaming row-block reduction of label-smoothed CE into per-partition sums."""
    p = pl.program_id(0)          # "parallel" partition axis (megacore on v7x)
    i = pl.program_id(1)          # "arbitrary" reduction axis over row blocks

    @pl.when(i == 0)
    def _():
        acc_ref[...] = jnp.zeros_like(acc_ref)

    x = x_ref[...].astype(jnp.float32)             # (TR, C)  (bf16 inputs upcast here)
    t = t_ref[...]                                 # (TR, 1) int32
    c = x.shape[-1]
    ones_c = jnp.ones((c, 1), dtype=jnp.float32)   # constant; hoisted by the compiler

    # Fused gather + mean: w[row, col] = smooth/C + conf * [col == target[row]]
    col = jax.lax.broadcasted_iota(jnp.int32, x.shape, 1)
    w = jnp.where(col == t, confidence + smooth_scale, smooth_scale)
    # Lane reductions on the (otherwise idle) MXU: (TR, C) @ (C, 1) -> (TR, 1).
    weighted = jnp.dot(w * x, ones_c, preferred_element_type=jnp.float32)

    # Numerically-stable log-sum-exp along the class (lane) axis.
    m = jnp.max(x, axis=-1, keepdims=True)                                   # (TR, 1)
    sum_e = jnp.dot(jnp.exp(x - m), ones_c, preferred_element_type=jnp.float32)
    lse = jnp.log(sum_e)                                                     # (TR, 1)

    # loss = conf*(-logprobs[t]) + smooth*(-mean(logprobs))
    #      = (m + lse) - [conf*x[t] + (smooth/C)*sum(x)]   (since conf + smooth = 1)
    loss = (m + lse) - weighted                                              # (TR, 1)

    # Mask rows past the real N.  Uses the LOGICAL (unclamped) block index so the
    # clamped/duplicated overrun block of the megacore split is fully zeroed.
    # Keep this as a true select (NOT a multiply): masked rows may hold garbage.
    block_idx = p * steps_per_part + i
    row0 = block_idx * block_rows
    local = jax.lax.broadcasted_iota(jnp.int32, (block_rows, 1), 0)
    valid = (row0 + local) < n_rows
    acc_ref[...] += jnp.where(valid, loss, 0.0)

    @pl.when(i == steps_per_part - 1)
    def _():
        out_ref[0, 0] = jnp.sum(acc_ref[...])      # one cross-lane reduce per partition


def _vmem_capacity_bytes():
    """Best-effort physical VMEM query; conservative (v7x) fallback."""
    try:
        info = pltpu.get_tpu_info()
        cap = int(getattr(info, "vmem_capacity_bytes", 0) or 0)
        if cap > 0:
            return cap
    except Exception:
        pass
    return 64 * 1024 * 1024


def label_smoothing_cross_entropy(x, target, smoothing=0.1, block_rows=None):
    """x: (N, C) float32/bf16 logits, target: (N,) int. Returns scalar f32 mean loss."""
    n, c = x.shape
    t2d = target.astype(jnp.int32).reshape(n, 1)
    itemsize = jnp.dtype(x.dtype).itemsize

    # Generation-aware VMEM budget: v5e/v6e have 128 MiB physical VMEM -> use a
    # 64 MiB scoped limit; v7x has 64 MiB -> stay at 32 MiB.
    phys_vmem = _vmem_capacity_bytes()
    vmem_limit = 64 * 1024 * 1024 if phys_vmem >= 100 * 1024 * 1024 else 32 * 1024 * 1024
    budget = (vmem_limit * 3) // 4           # headroom for layout padding / metadata

    if block_rows is None:
        # Largest multiple-of-8 row tile whose full working set fits the budget:
        #   2x double-buffered x tile (lane-padded to 128)
        # + 2x double-buffered (block_rows,1) int32 target tile (lane-pads to 512 B/row)
        # + (block_rows,1) f32 accumulator scratch (512 B/row).
        lanes = ((c + 127) // 128) * 128
        per_row = 2 * lanes * itemsize + 2 * 512 + 512
        rows = budget // per_row
        n_pad8 = ((n + 7) // 8) * 8
        block_rows = int(max(8, min((rows // 8) * 8, 8192, n_pad8)))
    assert block_rows % 8 == 0, "block_rows must be a multiple of 8"

    nblocks = (n + block_rows - 1) // block_rows
    # Megacore split: always 2 partitions when there are >=2 blocks.  Overrun
    # grid steps are clamped to the last real block in the index_maps and fully
    # masked in-kernel (mask uses the logical block index).
    num_parts = 2 if nblocks >= 2 else 1
    steps = (nblocks + num_parts - 1) // num_parts
    last_block = nblocks - 1

    kernel = functools.partial(
        _ls_ce_kernel,
        n_rows=n,
        smooth_scale=float(smoothing) / float(c),
        confidence=1.0 - float(smoothing),
        steps_per_part=steps,
        block_rows=block_rows,
    )

    def block_map(p, i):
        # Clamp so out-of-range steps re-read the last real block (then masked).
        return (jnp.minimum(p * steps + i, last_block), 0)

    cost = pl.CostEstimate(
        flops=int(8 * n * c),
        transcendentals=int(n * c),
        bytes_accessed=int(n * c * itemsize + n * 4 + num_parts * 4),
    )

    partials = pl.pallas_call(
        kernel,
        out_shape=jax.ShapeDtypeStruct((num_parts, 1), jnp.float32),
        grid_spec=pltpu.PrefetchScalarGridSpec(
            num_scalar_prefetch=0,
            grid=(num_parts, steps),
            in_specs=[
                pl.BlockSpec((block_rows, c), block_map),
                pl.BlockSpec((block_rows, 1), block_map),
            ],
            out_specs=pl.BlockSpec((1, 1), lambda p, i: (p, 0),
                                   memory_space=pltpu.SMEM),
            scratch_shapes=[pltpu.VMEM((block_rows, 1), jnp.float32)],
        ),
        compiler_params=pltpu.CompilerParams(
            dimension_semantics=("parallel", "arbitrary"),
            vmem_limit_bytes=int(vmem_limit),
        ),
        cost_estimate=cost,
    )(x, t2d)

    # Finalize (sum of per-partition partials, divide by N) in the wrapper so it
    # stays correct for any partition count.
    return jnp.sum(partials) / n


def _reference(x, target, smoothing=0.1):
    confidence = 1.0 - smoothing
    logprobs = jax.nn.log_softmax(x.astype(jnp.float32), axis=-1)
    nll = -jnp.take_along_axis(logprobs, target[:, None].astype(jnp.int32), axis=-1)[:, 0]
    smooth = -jnp.mean(logprobs, axis=-1)
    return jnp.mean(confidence * nll + smoothing * smooth)


if __name__ == "__main__":
    key = jax.random.PRNGKey(0)
    kx, kt = jax.random.split(key)

    # Small shape consistent with the module: (N, C) logits + (N,) class targets.
    N, C = 16, 32
    x = jax.random.normal(kx, (N, C), dtype=jnp.float32)
    target = jax.random.randint(kt, (N,), 0, C, dtype=jnp.int32)

    loss = label_smoothing_cross_entropy(x, target, smoothing=0.1)
    loss = jax.block_until_ready(loss)
    ref = _reference(x, target, smoothing=0.1)
    assert jnp.allclose(loss, ref, rtol=1e-5, atol=1e-5), (loss, ref)

    # Exercise the odd-block-count megacore path (clamped overrun block) and
    # in-block tail masking: 50 rows, block_rows=8 -> 7 blocks, 2 partitions.
    N2, C2 = 50, 40
    x2 = jax.random.normal(kx, (N2, C2), dtype=jnp.float32)
    t2 = jax.random.randint(kt, (N2,), 0, C2, dtype=jnp.int32)
    loss2 = jax.block_until_ready(
        label_smoothing_cross_entropy(x2, t2, smoothing=0.1, block_rows=8))
    ref2 = _reference(x2, t2, smoothing=0.1)
    assert jnp.allclose(loss2, ref2, rtol=1e-5, atol=1e-5), (loss2, ref2)

    print("KERNEL_OK")
</pallas_src>

<mosaic_0001>
module attributes {stable_mosaic.version = 11 : i64} {
  func.func @_ls_ce_kernel(%arg0: i32, %arg1: i32, %arg2: memref<16x32xf32, #tpu.memory_space<vmem>>, %arg3: memref<16x1xi32, #tpu.memory_space<vmem>>, %arg4: memref<1x1xf32, #tpu.memory_space<smem>>, %arg5: memref<16x1xf32, #tpu.memory_space<vmem>>) attributes {dimension_semantics = [#tpu.dimension_semantics<parallel>, #tpu.dimension_semantics<arbitrary>], iteration_bounds = array<i64: 1, 1>, scalar_prefetch = 0 : i64, scratch_operands = 1 : i64, tpu.core_type = #tpu.core_type<tc>, window_params = [{transform_indices = @transform_0, window_bounds = array<i64: 16, 32>}, {transform_indices = @transform_1, window_bounds = array<i64: 16, 1>}, {transform_indices = @transform_2, window_bounds = array<i64: 1, 1>}]} {
    %c0_i32 = arith.constant 0 : i32
    %0 = arith.cmpi eq, %arg1, %c0_i32 : i32
    %1 = arith.extui %0 : i1 to i32
    %c0_i32_0 = arith.constant 0 : i32
    %2 = arith.cmpi ne, %1, %c0_i32_0 : i32
    scf.if %2 {
      %cst_17 = arith.constant 0.000000e+00 : f32
      %39 = vector.broadcast %cst_17 : f32 to vector<16x1xf32>
      %c0_18 = arith.constant 0 : index
      %c0_19 = arith.constant 0 : index
      %40 = vector.load %arg5[%c0_18, %c0_19] : memref<16x1xf32, #tpu.memory_space<vmem>>, vector<16x1xf32>
      tpu.vector_store %arg5[%c0_18, %c0_19], %39 {strides = array<i32>} : memref<16x1xf32, #tpu.memory_space<vmem>>, vector<16x1xf32>,
    } else {
    }
    %c0 = arith.constant 0 : index
    %c0_1 = arith.constant 0 : index
    %3 = vector.load %arg2[%c0, %c0_1] : memref<16x32xf32, #tpu.memory_space<vmem>>, vector<16x32xf32>
    %c0_2 = arith.constant 0 : index
    %c0_3 = arith.constant 0 : index
    %4 = vector.load %arg3[%c0_2, %c0_3] : memref<16x1xi32, #tpu.memory_space<vmem>>, vector<16x1xi32>
    %cst = arith.constant 1.000000e+00 : f32
    %5 = vector.broadcast %cst : f32 to vector<32x1xf32>
    %6 = tpu.iota {dimensions = array<i32: 1>} : vector<16x32xi32>
    %7 = vector.broadcast %4 : vector<16x1xi32> to vector<16x32xi32>
    %8 = arith.cmpi eq, %6, %7 : vector<16x32xi32>
    %cst_4 = arith.constant 0.903124988 : f32
    %cst_5 = arith.constant 3.125000e-03 : f32
    %9 = vector.broadcast %cst_4 : f32 to vector<16x32xf32>
    %10 = vector.broadcast %cst_5 : f32 to vector<16x32xf32>
    %11 = arith.select %8, %9, %10 : vector<16x32xi1>, vector<16x32xf32>
    %12 = arith.mulf %11, %3 : vector<16x32xf32>
    %cst_6 = arith.constant dense<0.000000e+00> : vector<16x1xf32>
    %13 = tpu.matmul %12, %5, %cst_6 {dimension_numbers = #tpu.dot_dimension_numbers<[1], [0], [0], [1], [0, 0, 1, 1], [], []>} : vector<16x32xf32>, vector<32x1xf32>, vector<16x1xf32> -> vector<16x1xf32>
    %cst_7 = arith.constant dense<0xFF800000> : vector<16xf32>
    %14 = vector.multi_reduction <maximumf>, %3, %cst_7 [1] : vector<16x32xf32> to vector<16xf32>
    %15 = vector.shape_cast %14 : vector<16xf32> to vector<16x1xf32>
    %16 = vector.broadcast %15 : vector<16x1xf32> to vector<16x32xf32>
    %17 = arith.subf %3, %16 : vector<16x32xf32>
    %18 = math.exp %17 : vector<16x32xf32>
    %cst_8 = arith.constant dense<0.000000e+00> : vector<16x1xf32>
    %19 = tpu.matmul %18, %5, %cst_8 {dimension_numbers = #tpu.dot_dimension_numbers<[1], [0], [0], [1], [0, 0, 1, 1], [], []>} : vector<16x32xf32>, vector<32x1xf32>, vector<16x1xf32> -> vector<16x1xf32>
    %20 = math.log %19 : vector<16x1xf32>
    %21 = arith.addf %15, %20 : vector<16x1xf32>
    %22 = arith.subf %21, %13 : vector<16x1xf32>
    %c1_i32 = arith.constant 1 : i32
    %23 = arith.muli %arg0, %c1_i32 : i32
    %24 = arith.addi %23, %arg1 : i32
    %c16_i32 = arith.constant 16 : i32
    %25 = arith.muli %24, %c16_i32 : i32
    %26 = tpu.iota {dimensions = array<i32: 0>} : vector<16x1xi32>
    %27 = vector.broadcast %25 : i32 to vector<16x1xi32>
    %28 = arith.addi %27, %26 : vector<16x1xi32>
    %c16_i32_9 = arith.constant 16 : i32
    %29 = vector.broadcast %c16_i32_9 : i32 to vector<16x1xi32>
    %30 = arith.cmpi slt, %28, %29 : vector<16x1xi32>
    %c0_10 = arith.constant 0 : index
    %c0_11 = arith.constant 0 : index
    %31 = vector.load %arg5[%c0_10, %c0_11] : memref<16x1xf32, #tpu.memory_space<vmem>>, vector<16x1xf32>
    %cst_12 = arith.constant 0.000000e+00 : f32
    %32 = vector.broadcast %cst_12 : f32 to vector<16x1xf32>
    %33 = arith.select %30, %22, %32 : vector<16x1xi1>, vector<16x1xf32>
    %34 = arith.addf %31, %33 : vector<16x1xf32>
    %c0_13 = arith.constant 0 : index
    %c0_14 = arith.constant 0 : index
    %35 = vector.load %arg5[%c0_13, %c0_14] : memref<16x1xf32, #tpu.memory_space<vmem>>, vector<16x1xf32>
    tpu.vector_store %arg5[%c0_13, %c0_14], %34 {strides = array<i32>} : memref<16x1xf32, #tpu.memory_space<vmem>>, vector<16x1xf32>,
    %c0_i32_15 = arith.constant 0 : i32
    %36 = arith.cmpi eq, %arg1, %c0_i32_15 : i32
    %37 = arith.extui %36 : i1 to i32
    %c0_i32_16 = arith.constant 0 : i32
    %38 = arith.cmpi ne, %37, %c0_i32_16 : i32
    scf.if %38 {
      %c0_17 = arith.constant 0 : index
      %c0_18 = arith.constant 0 : index
      %39 = vector.load %arg5[%c0_17, %c0_18] : memref<16x1xf32, #tpu.memory_space<vmem>>, vector<16x1xf32>
      %40 = vector.shape_cast %39 : vector<16x1xf32> to vector<1x16x1xf32>
      %cst_19 = arith.constant dense<0.000000e+00> : vector<1xf32>
      %41 = vector.multi_reduction <add>, %40, %cst_19 [1, 2] : vector<1x16x1xf32> to vector<1xf32>
      %42 = vector.shape_cast %41 : vector<1xf32> to vector<1x1x1xf32>
      %43 = vector.extract %42[0, 0, 0] : f32 from vector<1x1x1xf32>
      %c0_20 = arith.constant 0 : index
      %c0_21 = arith.constant 0 : index
      %44 = memref.load %arg4[%c0_20, %c0_21] : memref<1x1xf32, #tpu.memory_space<smem>>
      memref.store %43, %arg4[%c0_20, %c0_21] : memref<1x1xf32, #tpu.memory_space<smem>>
    } else {
    }
    return
  }
  func.func @transform_0(%arg0: i32, %arg1: i32) -> (i32, i32) {
    %c1_i32 = arith.constant 1 : i32
    %0 = arith.muli %arg0, %c1_i32 : i32
    %1 = arith.addi %0, %arg1 : i32
    %c0_i32 = arith.constant 0 : i32
    %2 = arith.minsi %1, %c0_i32 : i32
    %c0_i32_0 = arith.constant 0 : i32
    %c0_i32_1 = arith.constant 0 : i32
    return %2, %c0_i32_0 : i32, i32
  }
  func.func @transform_1(%arg0: i32, %arg1: i32) -> (i32, i32) {
    %c1_i32 = arith.constant 1 : i32
    %0 = arith.muli %arg0, %c1_i32 : i32
    %1 = arith.addi %0, %arg1 : i32
    %c0_i32 = arith.constant 0 : i32
    %2 = arith.minsi %1, %c0_i32 : i32
    %c0_i32_0 = arith.constant 0 : i32
    %c0_i32_1 = arith.constant 0 : i32
    return %2, %c0_i32_0 : i32, i32
  }
  func.func @transform_2(%arg0: i32, %arg1: i32) -> (i32, i32) {
    %c0_i32 = arith.constant 0 : i32
    %c0_i32_0 = arith.constant 0 : i32
    return %arg0, %c0_i32 : i32, i32
  }
}

</mosaic_0001>

<llo_original>
// kernel: tpu_custom_call.1
$region0: #{tpu_custom_call.1}
  #allocation0 [shape = 'u32[]', space=smem, size = 0x4, offset = 0x4, fixed_abs, tag = 'smem constant byte address 0x4 - core index']
  #allocation1 [shape = 'u32[144,128]{1,0:T(1,128)}', space=vmem, size = 0x12000, scoped, tag = 'internal scratch']
  #allocation2 [shape = 'f32[16,1]{1,0:T(8,128)}', space=vmem, size = 0x2000, scoped, tag = 'scratch operand']
  %s0 = inlined_call_operand.vmem [shape: f32[16,32], index: 0, kind: input, shape index: {}]
  %s1 = inlined_call_operand.vmem [shape: s32[16,1], index: 1, kind: input, shape index: {}]
  %s2 = inlined_call_operand.hbm [shape: f32[1,1], index: 2, kind: output, shape index: {}]
  %s3 = sld [smem:[#allocation0]]
  $region26: #{tpu_custom_call.1} parent=0
    _
  %s5 = ssub.s32 1, %s3
  %s6 = scalar_select 0, %s5, %s3
  $region1: #{tpu_custom_call.1} parent=0
    #allocation3 [shape = 'u8[512]{0}', space=smem, size = 0x200, scoped, tag = 'output window, operand 0, single buffered']
    #allocation4 [shape = 's32[1]{0}', space=sflag, size = 0x4, scoped, tag = 'scoped memory for tpu_custom_call.1']
    %7 = vsyncpa [#allocation4], 0
    // Predicated region
    $region2: #{tpu_custom_call.1} parent=1 // pred_check
      _
    $region3: #{tpu_custom_call.1} parent=1 // pred_check_branch
      %9 = sbr.rel (0) target = $region5
    $region4: #{tpu_custom_call.1} parent=1 // pred_region
      %s10 = sadd.s32 0, 0
      %p11 = scmp.lt.s32.totalorder %s10, 0
      %s12 = scalar_select %p11, %s10, 0
      %s13 = smul.u32 2, %s12
      %p14 = scmp.lt.s32.totalorder %s13, 1
      %s15 = scalar_select %p14, %s13, 1
      %s16 = smul.addr %s15, 8
      %s17 = scalar_lea.vmem %s0, %s16
      %s18 = sadd.s32 0, 0
      %p19 = scmp.lt.s32.totalorder %s18, 0
      %s20 = scalar_select %p19, %s18, 0
      %s21 = smul.u32 2, %s20
    $region5: #{tpu_custom_call.1} parent=1 // pred_fallthru
      _
    // Predicated region
    $region6: #{tpu_custom_call.1} parent=1 // pred_check
      _
    $region7: #{tpu_custom_call.1} parent=1 // pred_check_branch
      %23 = sbr.rel (0) target = $region9
    $region8: #{tpu_custom_call.1} parent=1 // pred_region
      %s24 = sadd.s32 0, 0
      %p25 = scmp.lt.s32.totalorder %s24, 0
      %s26 = scalar_select %p25, %s24, 0
      %s27 = smul.u32 2, %s26
      %p28 = scmp.lt.s32.totalorder %s27, 1
      %s29 = scalar_select %p28, %s27, 1
      %s30 = smul.addr %s29, 8
      %s31 = scalar_lea.vmem %s1, %s30
      %s32 = sadd.s32 0, 0
      %p33 = scmp.lt.s32.totalorder %s32, 0
      %s34 = scalar_select %p33, %s32, 0
      %s35 = smul.u32 2, %s34
    $region9: #{tpu_custom_call.1} parent=1 // pred_fallthru
      _
    %s36 = sadd.s32 0, 0
    %p37 = scmp.lt.s32.totalorder %s36, 0
    %s38 = scalar_select %p37, %s36, 0
    %s39 = smul.u32 2, %s38
    %p40 = scmp.lt.s32.totalorder %s39, 1
    %s41 = scalar_select %p40, %s39, 1
    %s42 = smul.addr %s41, 8
    %s43 = scalar_lea.vmem %s0, %s42
    %s44 = sadd.s32 0, 0
    %p45 = scmp.lt.s32.totalorder %s44, 0
    %s46 = scalar_select %p45, %s44, 0
    %s47 = smul.u32 2, %s46
    %p48 = scmp.lt.s32.totalorder %s47, 1
    %s49 = scalar_select %p48, %s47, 1
    %s50 = smul.addr %s49, 8
    %s51 = scalar_lea.vmem %s1, %s50
    %s52 = sadd.s32 0, 0
    %p53 = scmp.lt.s32.totalorder %s52, 0
    %s54 = scalar_select %p53, %s52, 0
    %s55 = smul.u32 2, %s54
    %p56 = scmp.lt.s32.totalorder %s55, 1
    %s57 = scalar_select %p56, %s55, 1
    %s58 = smul.addr %s57, 8
    %s59 = scalar_lea.vmem %s0, %s58
    %s60 = sadd.s32 0, 0
    %p61 = scmp.lt.s32.totalorder %s60, 0
    %s62 = scalar_select %p61, %s60, 0
    %s63 = smul.u32 2, %s62
    %s64 = sadd.s32 0, 0
    %p65 = scmp.lt.s32.totalorder %s64, 0
    %s66 = scalar_select %p65, %s64, 0
    %s67 = smul.u32 2, %s66
    %p68 = scmp.lt.s32.totalorder %s67, 1
    %s69 = scalar_select %p68, %s67, 1
    %s70 = smul.addr %s69, 8
    %s71 = scalar_lea.vmem %s1, %s70
    %s72 = sadd.s32 0, 0
    %p73 = scmp.lt.s32.totalorder %s72, 0
    %s74 = scalar_select %p73, %s72, 0
    %s75 = smul.u32 2, %s74
    %p76 = scmp.eq.s32.totalorder 0, 0
    // Predicated region
    $region10: #{tpu_custom_call.1} parent=1 // pred_check
      %p77 = pneg %p76
    $region11: #{tpu_custom_call.1} parent=1 // pred_check_branch
      %79 = sbr.rel (%p77) target = $region13
    $region12: #{tpu_custom_call.1} parent=1 // pred_region
      %vm80 = vcmask 7168
      %81 = vst.msk [vmem:[#allocation2] sm:$0xff] %vm80, 0.0
      %82 = vst.msk [vmem:[#allocation2 + $0x8] sm:$0xff] %vm80, 0.0
    $region13: #{tpu_custom_call.1} parent=1 // pred_fallthru
      _
    %v83 = vld [vmem:[%s59] sm:$0xff]
    %v84 = vld [vmem:[%s59 + $0x8] sm:$0xff]
    %v85 = vld [vmem:[%s71] sm:$0xff]
    %v86 = vld [vmem:[%s71 + $0x8] sm:$0xff]
    %v87 = vlaneseq
    %v88 = vand.u32 %v87, 127
    %89 = vset.pattern.permute.xlu0 0
    %90 = vperm.xlu0 %89, %v85
    %v91 = vpop.permute.xlu0 %90
    %92 = vset.pattern.permute.xlu0 0
    %93 = vperm.xlu0 %92, %v86
    %v94 = vpop.permute.xlu0 %93
    %vm95 = vcmp.eq.s32.totalorder %v88, %v91
    %vm96 = vcmp.eq.s32.totalorder %v88, %v94
    %v97 = vsel %vm95, 0.903125, 0.003125
    %v98 = vsel %vm96, 0.903125, 0.003125
    %v99 = vmul.f32 %v97, %v83
    %v100 = vmul.f32 %v98, %v84
    %vm101 = vcmask 261120
    %v103 = vsel %vm101, %v99, 0
    %v106 = vsel %vm101, %v100, 0
    %108 = vmatprep.subr.mxu0 0.0
    %109 = vmatpush1.msra.mxu0 1.0
    %110 = vmatprep.subr.mxu0 0.0
    %111 = vmatpush1.msra.mxu0 1.0
    %112 = vmatprep.subr.mxu0 0.0
    %113 = vmatpush1.msra.mxu0 1.0
    %114 = vmatprep.subr.mxu0 0.0
    %115 = vmatpush1.msra.mxu0 1.0
    %116 = vmatprep.subr.mxu0 0.0
    %117 = vmatpush1.msra.mxu0 0.0
    %118 = vmatprep.subr.mxu0 0.0
    %119 = vmatpush1.msra.mxu0 0.0
    %120 = vmatprep.subr.mxu0 0.0
    %121 = vmatpush1.msra.mxu0 0.0
    %122 = vmatprep.subr.mxu0 0.0
    %123 = vmatpush1.msra.mxu0 0.0
    %124 = vmatprep.subr.mxu0 0.0
    %125 = vmatpush1.msra.mxu0 0.0
    %126 = vmatprep.subr.mxu0 0.0
    %127 = vmatpush1.msra.mxu0 0.0
    %128 = vmatprep.subr.mxu0 0.0
    %129 = vmatpush1.msra.mxu0 0.0
    %130 = vmatprep.subr.mxu0 0.0
    %131 = vmatpush1.msra.mxu0 0.0
    %132 = vmatprep.subr.mxu0 0.0
    %133 = vmatpush1.msra.mxu0 0.0
    %134 = vmatprep.subr.mxu0 0.0
    %135 = vmatpush1.msra.mxu0 0.0
    %136 = vmatprep.subr.mxu0 0.0
    %137 = vmatpush1.msra.mxu0 0.0
    %138 = vmatprep.subr.mxu0 0.0
    %139 = vmatpush1.msra.mxu0 0.0
    %140 = vmatprep.subr.mxu0 0.0
    %141 = vmatpush1.msra.mxu0 0.0
    %142 = vmatprep.subr.mxu0 0.0
    %143 = vmatpush1.msra.mxu0 0.0
    %144 = vmatprep.subr.mxu0 0.0
    %145 = vmatpush1.msra.mxu0 0.0
    %146 = vmatprep.subr.mxu0 0.0
    %147 = vmatpush1.msra.mxu0 0.0
    %148 = vmatprep.subr.mxu0 0.0
    %149 = vmatpush1.msra.mxu0 0.0
    %150 = vmatprep.subr.mxu0 0.0
    %151 = vmatpush1.msra.mxu0 0.0
    %152 = vmatprep.subr.mxu0 0.0
    %153 = vmatpush1.msra.mxu0 0.0
    %154 = vmatprep.subr.mxu0 0.0
    %155 = vmatpush1.msra.mxu0 0.0
    %156 = vmatprep.subr.mxu0 0.0
    %157 = vmatpush1.msra.mxu0 0.0
    %158 = vmatprep.subr.mxu0 0.0
    %159 = vmatpush1.msra.mxu0 0.0
    %160 = vmatprep.subr.mxu0 0.0
    %161 = vmatpush1.msra.mxu0 0.0
    %162 = vmatprep.subr.mxu0 0.0
    %163 = vmatpush1.msra.mxu0 0.0
    %164 = vmatprep.subr.mxu0 0.0
    %165 = vmatpush1.msra.mxu0 0.0
    %166 = vmatprep.subr.mxu0 0.0
    %167 = vmatpush1.msra.mxu0 0.0
    %168 = vmatprep.subr.mxu0 0.0
    %169 = vmatpush1.msra.mxu0 0.0
    %170 = vmatprep.subr.mxu0 0.0
    %171 = vmatpush1.msra.mxu0 0.0
    %172 = vmatprep.mubr.f32.mxu0 0.0
    %173 = vmatmul.mubr.f32.gmra.mrb[0].mxu0 %v103
    %v174 = vpop.f32.mrb[0].mxu0
    %v175 = vadd.f32 0.0, %v174
    %v176 = vpop.f32.mrb[0].mxu0
    %177 = vmatprep.mubr.f32.mxu0 0.0
    %178 = vmatmul.mubr.f32.gmra.mrb[0].mxu0 %v106
    %v179 = vpop.f32.mrb[0].mxu0
    %v180 = vadd.f32 0.0, %v179
    %v181 = vpop.f32.mrb[0].mxu0
    %182 = vdwg.mxu0
    %v183 = vsel %vm101, %v83, -inf
    %184 = vmax.xlane.f32.xlu0 %v183
    %v185 = vpop.xlane.xlu0 %184
    %v186 = vsel %vm101, %v84, -inf
    %187 = vmax.xlane.f32.xlu0 %v186
    %v188 = vpop.xlane.xlu0 %187
    %v189 = vsub.f32 %v83, %v185
    %v190 = vsub.f32 %v84, %v188
    %v191 = vmul.f32 %v189, 1.442695
    %v192 = vpow.pop %v191
    %v193 = vmul.f32 %v190, 1.442695
    %v194 = vpow.pop %v193
    %v196 = vsel %vm101, %v192, 0
    %v199 = vsel %vm101, %v194, 0
    %201 = vmatprep.subr.mxu0 0.0
    %202 = vmatpush1.msra.mxu0 1.0
    %203 = vmatprep.subr.mxu0 0.0
    %204 = vmatpush1.msra.mxu0 1.0
    %205 = vmatprep.subr.mxu0 0.0
    %206 = vmatpush1.msra.mxu0 1.0
    %207 = vmatprep.subr.mxu0 0.0
    %208 = vmatpush1.msra.mxu0 1.0
    %209 = vmatprep.subr.mxu0 0.0
    %210 = vmatpush1.msra.mxu0 0.0
    %211 = vmatprep.subr.mxu0 0.0
    %212 = vmatpush1.msra.mxu0 0.0
    %213 = vmatprep.subr.mxu0 0.0
    %214 = vmatpush1.msra.mxu0 0.0
    %215 = vmatprep.subr.mxu0 0.0
    %216 = vmatpush1.msra.mxu0 0.0
    %217 = vmatprep.subr.mxu0 0.0
    %218 = vmatpush1.msra.mxu0 0.0
    %219 = vmatprep.subr.mxu0 0.0
    %220 = vmatpush1.msra.mxu0 0.0
    %221 = vmatprep.subr.mxu0 0.0
    %222 = vmatpush1.msra.mxu0 0.0
    %223 = vmatprep.subr.mxu0 0.0
    %224 = vmatpush1.msra.mxu0 0.0
    %225 = vmatprep.subr.mxu0 0.0
    %226 = vmatpush1.msra.mxu0 0.0
    %227 = vmatprep.subr.mxu0 0.0
    %228 = vmatpush1.msra.mxu0 0.0
    %229 = vmatprep.subr.mxu0 0.0
    %230 = vmatpush1.msra.mxu0 0.0
    %231 = vmatprep.subr.mxu0 0.0
    %232 = vmatpush1.msra.mxu0 0.0
    %233 = vmatprep.subr.mxu0 0.0
    %234 = vmatpush1.msra.mxu0 0.0
    %235 = vmatprep.subr.mxu0 0.0
    %236 = vmatpush1.msra.mxu0 0.0
    %237 = vmatprep.subr.mxu0 0.0
    %238 = vmatpush1.msra.mxu0 0.0
    %239 = vmatprep.subr.mxu0 0.0
    %240 = vmatpush1.msra.mxu0 0.0
    %241 = vmatprep.subr.mxu0 0.0
    %242 = vmatpush1.msra.mxu0 0.0
    %243 = vmatprep.subr.mxu0 0.0
    %244 = vmatpush1.msra.mxu0 0.0
    %245 = vmatprep.subr.mxu0 0.0
    %246 = vmatpush1.msra.mxu0 0.0
    %247 = vmatprep.subr.mxu0 0.0
    %248 = vmatpush1.msra.mxu0 0.0
    %249 = vmatprep.subr.mxu0 0.0
    %250 = vmatpush1.msra.mxu0 0.0
    %251 = vmatprep.subr.mxu0 0.0
    %252 = vmatpush1.msra.mxu0 0.0
    %253 = vmatprep.subr.mxu0 0.0
    %254 = vmatpush1.msra.mxu0 0.0
    %255 = vmatprep.subr.mxu0 0.0
    %256 = vmatpush1.msra.mxu0 0.0
    %257 = vmatprep.subr.mxu0 0.0
    %258 = vmatpush1.msra.mxu0 0.0
    %259 = vmatprep.subr.mxu0 0.0
    %260 = vmatpush1.msra.mxu0 0.0
    %261 = vmatprep.subr.mxu0 0.0
    %262 = vmatpush1.msra.mxu0 0.0
    %263 = vmatprep.subr.mxu0 0.0
    %264 = vmatpush1.msra.mxu0 0.0
    %265 = vmatprep.mubr.f32.mxu0 0.0
    %266 = vmatmul.mubr.f32.gmra.mrb[0].mxu0 %v196
    %v267 = vpop.f32.mrb[0].mxu0
    %v268 = vadd.f32 0.0, %v267
    %v269 = vpop.f32.mrb[0].mxu0
    %270 = vmatprep.mubr.f32.mxu0 0.0
    %271 = vmatmul.mubr.f32.gmra.mrb[0].mxu0 %v199
    %v272 = vpop.f32.mrb[0].mxu0
    %v273 = vadd.f32 0.0, %v272
    %v274 = vpop.f32.mrb[0].mxu0
    %275 = vdwg.mxu0
    %v276 = vlog2.pop %v268
    %v277 = vmul.f32 %v276, 0.6931472
    %v278 = vlog2.pop %v273
    %v279 = vmul.f32 %v278, 0.6931472
    %v280 = vadd.f32 %v185, %v277
    %v281 = vadd.f32 %v188, %v279
    %v282 = vsub.f32 %v280, %v175
    %v283 = vsub.f32 %v281, %v180
    %s284 = sadd.s32 0, 0
    %s285 = smul.u32 %s284, 16
    %v286 = vlaneseq
    %v287 = vshrl.u32 %v286, 7
    %v288 = vadd.s32 %v287, 8
    %v289 = vstv %s285
    %v290 = vadd.s32 %v289, %v287
    %v291 = vadd.s32 %v289, %v288
    %vm292 = vcmp.lt.s32.totalorder %v290, 16
    %vm293 = vcmp.lt.s32.totalorder %v291, 16
    %v294 = vld [vmem:[#allocation2] sm:$0xff]
    %v295 = vld [vmem:[#allocation2 + $0x8] sm:$0xff]
    %v296 = vsel %vm292, %v282, 0.0
    %v297 = vsel %vm293, %v283, 0.0
    %v298 = vadd.f32 %v294, %v296
    %v299 = vadd.f32 %v295, %v297
    %vm300 = vcmask 7168
    %301 = vst.msk [vmem:[#allocation2] sm:$0xff] %vm300, %v298
    %302 = vst.msk [vmem:[#allocation2 + $0x8] sm:$0xff] %vm300, %v299
    // Predicated region
    $region14: #{tpu_custom_call.1} parent=1 // pred_check
      %p303 = pneg %p76
    $region15: #{tpu_custom_call.1} parent=1 // pred_check_branch
      %305 = sbr.rel (%p303) target = $region17
    $region16: #{tpu_custom_call.1} parent=1 // pred_region
      %v306 = vld [vmem:[#allocation2] sm:$0xff]
      %v307 = vld [vmem:[#allocation2 + $0x8] sm:$0xff]
      %v308 = vsel %vm300, %v306, 0.0
      %v309 = vsel %vm300, %v307, 0.0
      %v310 = vadd.f32 %v308, %v309
      %311 = vadd.xlane.f32.xlu0 %v310
      %v312 = vpop.xlane.xlu0 %311
      %v313 = vrot.slane %v312, 4
      %v314 = vadd.f32 %v312, %v313
      %v315 = vrot.slane %v314, 2
      %v316 = vadd.f32 %v314, %v315
      %v317 = vrot.slane %v316, 1
      %v318 = vadd.f32 %v316, %v317
      %s319 = vtos %v318
      %s320 = scalar_lea.smem [#allocation3], 0
      %321 = sst [smem:[%s320]] %s319
    $region17: #{tpu_custom_call.1} parent=1 // pred_fallthru
      _
    // Predicated region
    $region18: #{tpu_custom_call.1} parent=1 // pred_check
      _
    $region19: #{tpu_custom_call.1} parent=1 // pred_check_branch
      %323 = sbr.rel (0) target = $region21
    $region20: #{tpu_custom_call.1} parent=1 // pred_region
      %s325 = ssub.s32 16, 16
      %326 = vsyncadd [#allocation4], %s325
      %329 = dma.smem_to_hbm [#allocation3], 16, %s2, [#allocation4]
    $region21: #{tpu_custom_call.1} parent=1 // pred_fallthru
      _
    // Predicated region
    $region22: #{tpu_custom_call.1} parent=1 // pred_check
      _
    $region23: #{tpu_custom_call.1} parent=1 // pred_check_branch
      %331 = sbr.rel (0) target = $region25
    $region24: #{tpu_custom_call.1} parent=1 // pred_region
      %332 = dma.done [#allocation4], 16
    $region25: #{tpu_custom_call.1} parent=1 // pred_fallthru
      _
    %333 = sfence
    %334 = vsyncpa [#allocation4], 1

</llo_original>
